<compile_context>
chip_gen: v5e
topology: v5e:2x2
jax: 0.10.0
libtpu: 0.0.40
codegen_flags: <defaults>
</compile_context>

<pallas_src>
import functools

import jax
import jax.numpy as jnp
from jax.experimental import pallas as pl
from jax.experimental.pallas import tpu as pltpu

BN_EPS = 1e-5
LANE = 128
SUBLANE = 8


def _round_up(x, m):
    return (x + m - 1) // m * m


def _pick_row_tile(np_rows, itemsize, budget_bytes=8 << 20):
    """Largest multiple-of-8 row tile (<=512) whose double-buffered (TM, Np) adjacency
    slab stays within `budget_bytes` of VMEM (keeps v7x's 64 MiB VMEM comfortable)."""
    cap = budget_bytes // max(2 * np_rows * itemsize, 1)
    cap = max(SUBLANE, (cap // SUBLANE) * SUBLANE)
    return int(min(512, _round_up(np_rows, SUBLANE), cap))


def _compiler_params(buffer_bytes):
    # buffer_bytes already includes double-buffering; add headroom, never go below the
    # common default scoped limit, cap at v7x physical VMEM.
    limit = int(min(max(buffer_bytes * 3 // 2 + (2 << 20), 32 << 20), 64 << 20))
    return pltpu.CompilerParams(
        dimension_semantics=("parallel",),  # row tiles are independent (megacore on v7x)
        vmem_limit_bytes=limit,
    )


# ----------------------------------------------------------------------------- kernels


def _xw_kernel(fp, x_ref, wcat_ref, br_ref, xwg_ref, res_ref):
    """One packed matmul: X @ [Wg | Wr] (lane occupancy 2*fp), then split.
    xwg (no bias — GraphConv adds bias after aggregation) and res = X@Wr + br."""
    xw = jnp.dot(x_ref[...], wcat_ref[...], preferred_element_type=jnp.float32)
    xwg_ref[...] = xw[:, :fp].astype(xwg_ref.dtype)
    res_ref[...] = xw[:, fp:] + br_ref[...]


def _agg_kernel(n_valid, tm, a_ref, xwg_ref, res_ref, bg_ref, h_ref, stats_ref):
    """h = A_hat_tile @ XWg + bg + res_tile, plus per-tile BN moments (sum, sum^2)
    masked to the real (unpadded) node rows."""
    h = jnp.dot(a_ref[...], xwg_ref[...], preferred_element_type=jnp.float32)
    h = h + bg_ref[...] + res_ref[...]
    h_ref[...] = h

    row0 = pl.program_id(0) * tm
    rows = row0 + jax.lax.broadcasted_iota(jnp.int32, (tm, 1), 0)
    hm = jnp.where(rows < n_valid, h, 0.0)
    stats_ref[0, 0:1, :] = jnp.sum(hm, axis=0, keepdims=True)
    stats_ref[0, 1:2, :] = jnp.sum(hm * hm, axis=0, keepdims=True)


def _norm_kernel(h_ref, scale_ref, shift_ref, o_ref):
    """Second pass: out = h * scale + shift (scale/shift fold gamma, beta, mean, rsqrt)."""
    o_ref[...] = h_ref[...] * scale_ref[...] + shift_ref[...]


# ----------------------------------------------------------------------------- wrapper


def gcn_layer(a_hat, feats, w_gnn, b_gnn, w_res, b_res, gamma, beta,
              *, matmul_dtype=jnp.bfloat16):
    n, f_in = feats.shape
    f_out = w_gnn.shape[1]
    f32 = jnp.float32
    m_bytes = jnp.dtype(matmul_dtype).itemsize

    fp = _round_up(f_out, LANE)                    # lane-dense feature dim
    np0 = _round_up(n, SUBLANE)
    tm = _pick_row_tile(np0, m_bytes)              # row tile for the A_hat sweep
    npad = _round_up(n, tm)
    n_tiles = npad // tm

    # ---- pad operands (zero padding keeps the math exact; padded rows are masked) ----
    a_p = jnp.zeros((npad, npad), matmul_dtype).at[:n, :n].set(a_hat.astype(matmul_dtype))
    x_p = jnp.zeros((npad, f_in), f32).at[:n, :].set(feats.astype(f32))
    wg_p = jnp.zeros((f_in, fp), f32).at[:, :f_out].set(w_gnn.astype(f32))
    wr_p = jnp.zeros((f_in, fp), f32).at[:, :f_out].set(w_res.astype(f32))
    w_cat = jnp.concatenate([wg_p, wr_p], axis=1)  # (f_in, 2*fp): single MXU pass
    bg_p = jnp.zeros((1, fp), f32).at[:, :f_out].set(b_gnn.reshape(1, -1).astype(f32))
    br_p = jnp.zeros((1, fp), f32).at[:, :f_out].set(b_res.reshape(1, -1).astype(f32))
    gamma_p = jnp.zeros((1, fp), f32).at[:, :f_out].set(gamma.reshape(1, -1).astype(f32))
    beta_p = jnp.zeros((1, fp), f32).at[:, :f_out].set(beta.reshape(1, -1).astype(f32))

    # ---- kernel 1: packed X @ [Wg | Wr] ----
    buf1 = 2 * (tm * f_in * 4 + f_in * 2 * fp * 4 + fp * 4
                + tm * fp * m_bytes + tm * fp * 4)
    xwg, res = pl.pallas_call(
        functools.partial(_xw_kernel, fp),
        out_shape=(jax.ShapeDtypeStruct((npad, fp), matmul_dtype),
                   jax.ShapeDtypeStruct((npad, fp), f32)),
        grid_spec=pltpu.PrefetchScalarGridSpec(
            num_scalar_prefetch=0,
            grid=(n_tiles,),
            in_specs=[
                pl.BlockSpec((tm, f_in), lambda i: (i, 0)),
                pl.BlockSpec((f_in, 2 * fp), lambda i: (0, 0)),
                pl.BlockSpec((1, fp), lambda i: (0, 0)),
            ],
            out_specs=(pl.BlockSpec((tm, fp), lambda i: (i, 0)),
                       pl.BlockSpec((tm, fp), lambda i: (i, 0))),
        ),
        compiler_params=_compiler_params(buf1),
        cost_estimate=pl.CostEstimate(
            flops=2 * npad * f_in * 2 * fp, transcendentals=0,
            bytes_accessed=npad * f_in * 4 + f_in * 2 * fp * 4 + npad * fp * (m_bytes + 4)),
    )(x_p, w_cat, br_p)

    # ---- kernel 2: streamed A_hat row tiles @ XWg + residual, + per-tile BN moments ----
    buf2 = 2 * (tm * npad * m_bytes + npad * fp * m_bytes + tm * fp * 4 + fp * 4
                + tm * fp * 4 + 2 * fp * 4)
    h, stats = pl.pallas_call(
        functools.partial(_agg_kernel, n, tm),
        out_shape=(jax.ShapeDtypeStruct((npad, fp), f32),
                   jax.ShapeDtypeStruct((n_tiles, 2, fp), f32)),
        grid_spec=pltpu.PrefetchScalarGridSpec(
            num_scalar_prefetch=0,
            grid=(n_tiles,),
            in_specs=[
                pl.BlockSpec((tm, npad), lambda i: (i, 0)),   # a_hat tile (streamed, DMA overlaps)
                pl.BlockSpec((npad, fp), lambda i: (0, 0)),   # XWg (resident, DMA'd once)
                pl.BlockSpec((tm, fp), lambda i: (i, 0)),     # residual rows
                pl.BlockSpec((1, fp), lambda i: (0, 0)),      # GraphConv bias
            ],
            out_specs=(pl.BlockSpec((tm, fp), lambda i: (i, 0)),
                       pl.BlockSpec((1, 2, fp), lambda i: (i, 0, 0))),
        ),
        compiler_params=_compiler_params(buf2),
        cost_estimate=pl.CostEstimate(
            flops=2 * npad * npad * fp + 4 * npad * fp, transcendentals=0,
            bytes_accessed=npad * npad * m_bytes + npad * fp * (m_bytes + 8)
                           + n_tiles * 2 * fp * 4),
    )(a_p, xwg, res, bg_p)

    # ---- tiny cross-tile reduction + BN scale/shift fold (f32, exact over all N nodes) ----
    sums = jnp.sum(stats, axis=0)                                  # (2, fp)
    mean = sums[0:1, :] / n
    var = jnp.maximum(sums[1:2, :] / n - mean * mean, 0.0)         # E[h^2] - mean^2
    inv_std = jax.lax.rsqrt(var + BN_EPS)
    scale = gamma_p * inv_std
    shift = beta_p - mean * scale

    # ---- kernel 3: lane-dense normalize pass ----
    buf3 = 2 * (2 * tm * fp * 4 + 2 * fp * 4)
    out = pl.pallas_call(
        _norm_kernel,
        out_shape=jax.ShapeDtypeStruct((npad, fp), f32),
        grid_spec=pltpu.PrefetchScalarGridSpec(
            num_scalar_prefetch=0,
            grid=(n_tiles,),
            in_specs=[
                pl.BlockSpec((tm, fp), lambda i: (i, 0)),
                pl.BlockSpec((1, fp), lambda i: (0, 0)),
                pl.BlockSpec((1, fp), lambda i: (0, 0)),
            ],
            out_specs=pl.BlockSpec((tm, fp), lambda i: (i, 0)),
        ),
        compiler_params=_compiler_params(buf3),
        cost_estimate=pl.CostEstimate(
            flops=2 * npad * fp, transcendentals=0,
            bytes_accessed=2 * npad * fp * 4 + 2 * fp * 4),
    )(h, scale, shift)

    return out[:n, :f_out]


# --------------------------------------------------------------------------- reference


def reference(a_hat, feats, w_gnn, b_gnn, w_res, b_res, gamma, beta):
    new = a_hat @ (feats @ w_gnn) + b_gnn
    res = feats @ w_res + b_res
    h = new + res
    mean = h.mean(axis=0, keepdims=True)
    var = ((h - mean) ** 2).mean(axis=0, keepdims=True)
    return (h - mean) / jnp.sqrt(var + BN_EPS) * gamma + beta


def build_normalized_adjacency(key, n):
    """Random undirected graph with self loops, D^-1/2 (A+I) D^-1/2."""
    raw = jax.random.uniform(key, (n, n))
    adj = (raw + raw.T > 1.2).astype(jnp.float32)
    adj = adj * (1.0 - jnp.eye(n)) + jnp.eye(n)
    deg = adj.sum(axis=1)
    d_inv_sqrt = 1.0 / jnp.sqrt(jnp.maximum(deg, 1.0))
    return adj * d_inv_sqrt[:, None] * d_inv_sqrt[None, :]


if __name__ == "__main__":
    key = jax.random.PRNGKey(0)
    k_adj, k_x, k_wg, k_bg, k_wr, k_br = jax.random.split(key, 6)

    N, F_IN, F_OUT = 16, 8, 32

    a_hat = build_normalized_adjacency(k_adj, N)
    feats = jax.random.normal(k_x, (N, F_IN), dtype=jnp.float32)

    # Deterministic parameter init (synthetic, not a checkpoint load).
    w_gnn = jax.random.normal(k_wg, (F_IN, F_OUT), dtype=jnp.float32) * 0.1
    b_gnn = jax.random.normal(k_bg, (1, F_OUT), dtype=jnp.float32) * 0.1
    w_res = jax.random.normal(k_wr, (F_IN, F_OUT), dtype=jnp.float32) * 0.1
    b_res = jax.random.normal(k_br, (1, F_OUT), dtype=jnp.float32) * 0.1
    gamma = jnp.ones((1, F_OUT), dtype=jnp.float32)   # BatchNorm1d default init
    beta = jnp.zeros((1, F_OUT), dtype=jnp.float32)

    ref = reference(a_hat, feats, w_gnn, b_gnn, w_res, b_res, gamma, beta)

    # f32 matmul path (v5e-style / strict accuracy): tight check.
    out_f32 = gcn_layer(a_hat, feats, w_gnn, b_gnn, w_res, b_res, gamma, beta,
                        matmul_dtype=jnp.float32)
    out_f32 = jax.block_until_ready(out_f32)
    assert out_f32.shape == (N, F_OUT)
    assert jnp.allclose(out_f32, ref, atol=1e-4, rtol=1e-4), "f32 path mismatch vs reference"

    # bf16 streamed-adjacency path (v6e/v7x-style): f32 accumulation, looser tolerance.
    out_bf16 = gcn_layer(a_hat, feats, w_gnn, b_gnn, w_res, b_res, gamma, beta,
                         matmul_dtype=jnp.bfloat16)
    out_bf16 = jax.block_until_ready(out_bf16)
    assert out_bf16.shape == (N, F_OUT)
    assert jnp.allclose(out_bf16, ref, atol=5e-2, rtol=5e-2), "bf16 path mismatch vs reference"

    print("KERNEL_OK")
</pallas_src>

<mosaic_0001>
module attributes {stable_mosaic.version = 11 : i64} {
  func.func @_xw_kernel(%arg0: i32, %arg1: memref<16x8xf32, #tpu.memory_space<vmem>>, %arg2: memref<8x256xf32, #tpu.memory_space<vmem>>, %arg3: memref<1x128xf32, #tpu.memory_space<vmem>>, %arg4: memref<16x128xf32, #tpu.memory_space<vmem>>, %arg5: memref<16x128xf32, #tpu.memory_space<vmem>>) attributes {dimension_semantics = [#tpu.dimension_semantics<parallel>], iteration_bounds = array<i64: 1>, scalar_prefetch = 0 : i64, scratch_operands = 0 : i64, tpu.core_type = #tpu.core_type<tc>, window_params = [{transform_indices = @transform_0, window_bounds = array<i64: 16, 8>}, {pipeline_mode = #tpu.pipeline_mode<synchronous>, transform_indices = @transform_1, window_bounds = array<i64: 8, 256>}, {pipeline_mode = #tpu.pipeline_mode<synchronous>, transform_indices = @transform_2, window_bounds = array<i64: 1, 128>}, {transform_indices = @transform_3, window_bounds = array<i64: 16, 128>}, {transform_indices = @transform_4, window_bounds = array<i64: 16, 128>}]} {
    %c0 = arith.constant 0 : index
    %c0_0 = arith.constant 0 : index
    %0 = vector.load %arg1[%c0, %c0_0] : memref<16x8xf32, #tpu.memory_space<vmem>>, vector<16x8xf32>
    %c0_1 = arith.constant 0 : index
    %c0_2 = arith.constant 0 : index
    %1 = vector.load %arg2[%c0_1, %c0_2] : memref<8x256xf32, #tpu.memory_space<vmem>>, vector<8x256xf32>
    %cst = arith.constant dense<0.000000e+00> : vector<16x256xf32>
    %2 = tpu.matmul %0, %1, %cst {dimension_numbers = #tpu.dot_dimension_numbers<[1], [0], [0], [1], [0, 0, 1, 1], [], []>} : vector<16x8xf32>, vector<8x256xf32>, vector<16x256xf32> -> vector<16x256xf32>
    %3 = vector.extract_strided_slice %2 {offsets = [0, 0], sizes = [16, 128], strides = [1, 1]} : vector<16x256xf32> to vector<16x128xf32>
    %c0_3 = arith.constant 0 : index
    %c0_4 = arith.constant 0 : index
    %4 = vector.load %arg4[%c0_3, %c0_4] : memref<16x128xf32, #tpu.memory_space<vmem>>, vector<16x128xf32>
    tpu.vector_store %arg4[%c0_3, %c0_4], %3 {strides = array<i32>} : memref<16x128xf32, #tpu.memory_space<vmem>>, vector<16x128xf32>,
    %5 = vector.extract_strided_slice %2 {offsets = [0, 128], sizes = [16, 128], strides = [1, 1]} : vector<16x256xf32> to vector<16x128xf32>
    %c0_5 = arith.constant 0 : index
    %c0_6 = arith.constant 0 : index
    %6 = vector.load %arg3[%c0_5, %c0_6] : memref<1x128xf32, #tpu.memory_space<vmem>>, vector<1x128xf32>
    %7 = vector.broadcast %6 : vector<1x128xf32> to vector<16x128xf32>
    %8 = arith.addf %5, %7 : vector<16x128xf32>
    %c0_7 = arith.constant 0 : index
    %c0_8 = arith.constant 0 : index
    %9 = vector.load %arg5[%c0_7, %c0_8] : memref<16x128xf32, #tpu.memory_space<vmem>>, vector<16x128xf32>
    tpu.vector_store %arg5[%c0_7, %c0_8], %8 {strides = array<i32>} : memref<16x128xf32, #tpu.memory_space<vmem>>, vector<16x128xf32>,
    return
  }
  func.func @transform_0(%arg0: i32) -> (i32, i32) {
    %c0_i32 = arith.constant 0 : i32
    %c0_i32_0 = arith.constant 0 : i32
    return %arg0, %c0_i32 : i32, i32
  }
  func.func @transform_1(%arg0: i32) -> (i32, i32) {
    %c0_i32 = arith.constant 0 : i32
    %c0_i32_0 = arith.constant 0 : i32
    %c0_i32_1 = arith.constant 0 : i32
    return %c0_i32, %c0_i32_0 : i32, i32
  }
  func.func @transform_2(%arg0: i32) -> (i32, i32) {
    %c0_i32 = arith.constant 0 : i32
    %c0_i32_0 = arith.constant 0 : i32
    %c0_i32_1 = arith.constant 0 : i32
    return %c0_i32, %c0_i32_0 : i32, i32
  }
  func.func @transform_3(%arg0: i32) -> (i32, i32) {
    %c0_i32 = arith.constant 0 : i32
    %c0_i32_0 = arith.constant 0 : i32
    return %arg0, %c0_i32 : i32, i32
  }
  func.func @transform_4(%arg0: i32) -> (i32, i32) {
    %c0_i32 = arith.constant 0 : i32
    %c0_i32_0 = arith.constant 0 : i32
    return %arg0, %c0_i32 : i32, i32
  }
}

</mosaic_0001>

<llo_original>
// kernel: tpu_custom_call.1
$region0: #{tpu_custom_call.1}
  #allocation0 [shape = 'u32[]', space=smem, size = 0x4, offset = 0x4, fixed_abs, tag = 'smem constant byte address 0x4 - core index']
  #allocation1 [shape = 'u32[72,128]{1,0:T(1,128)}', space=vmem, size = 0x9000, scoped, tag = 'internal scratch']
  %s0 = inlined_call_operand.vmem [shape: f32[16,8], index: 0, kind: input, shape index: {}]
  %s1 = inlined_call_operand.vmem [shape: f32[8,256], index: 1, kind: input, shape index: {}]
  %s2 = inlined_call_operand.vmem [shape: f32[1,128], index: 2, kind: input, shape index: {}]
  %s3 = inlined_call_operand.hbm [shape: f32[16,128], index: 3, kind: output, shape index: {0}]
  %s4 = inlined_call_operand.hbm [shape: f32[16,128], index: 4, kind: output, shape index: {1}]
  %5 = xla_tuple %s3, %s4
  %s6 = sld [smem:[#allocation0]]
  $region30: #{tpu_custom_call.1} parent=0
    _
  %s8 = ssub.s32 1, %s6
  %s9 = scalar_select 0, %s8, %s6
  $region1: #{tpu_custom_call.1} parent=0
    #allocation2 [shape = 'u8[8192]{0}', space=vmem, size = 0x2000, scoped, tag = 'output window, operand 0, single buffered']
    #allocation3 [shape = 's32[1]{0}', space=sflag, size = 0x4, scoped, tag = 'scoped memory for tpu_custom_call.1']
    #allocation4 [shape = 'u8[8192]{0}', space=vmem, size = 0x2000, scoped, tag = 'output window, operand 1, single buffered']
    #allocation5 [shape = 's32[1]{0}', space=sflag, size = 0x4, scoped, tag = 'scoped memory for tpu_custom_call.1']
    %10 = vsyncpa [#allocation3], 0
    %11 = vsyncpa [#allocation5], 0
    // Predicated region
    $region2: #{tpu_custom_call.1} parent=1 // pred_check
      _
    $region3: #{tpu_custom_call.1} parent=1 // pred_check_branch
      %13 = sbr.rel (0) target = $region5
    $region4: #{tpu_custom_call.1} parent=1 // pred_region
      _
    $region5: #{tpu_custom_call.1} parent=1 // pred_fallthru
      _
    // Predicated region
    $region6: #{tpu_custom_call.1} parent=1 // pred_check
      _
    $region7: #{tpu_custom_call.1} parent=1 // pred_check_branch
      %15 = sbr.rel (0) target = $region9
    $region8: #{tpu_custom_call.1} parent=1 // pred_region
      _
    $region9: #{tpu_custom_call.1} parent=1 // pred_fallthru
      _
    // Predicated region
    $region10: #{tpu_custom_call.1} parent=1 // pred_check
      _
    $region11: #{tpu_custom_call.1} parent=1 // pred_check_branch
      %17 = sbr.rel (0) target = $region13
    $region12: #{tpu_custom_call.1} parent=1 // pred_region
      _
    $region13: #{tpu_custom_call.1} parent=1 // pred_fallthru
      _
    %v18 = vld [vmem:[%s0] sm:$0xff]
    %v19 = vld [vmem:[%s0 + $0x8] sm:$0xff]
    %v20 = vld [vmem:[%s1] sm:$0xff]
    %v21 = vld [vmem:[%s1 + $0x8] sm:$0xff]
    %vm22 = vcmask 64512
    %v24 = vsel %vm22, %v18, 0
    %v27 = vsel %vm22, %v19, 0
    %29 = vmatpush.msra.mxu0 0.0
    %30 = vmatpush.msra.mxu0 0.0
    %31 = vmatpush.msra.mxu0 0.0
    %32 = vmatpush.msra.mxu0 0.0
    %33 = vmatpush.msra.mxu0 0.0
    %34 = vmatpush.msra.mxu0 0.0
    %35 = vmatpush.msra.mxu0 0.0
    %36 = vmatpush.msra.mxu0 0.0
    %37 = vmatpush.msra.mxu0 0.0
    %38 = vmatpush.msra.mxu0 0.0
    %39 = vmatpush.msra.mxu0 0.0
    %40 = vmatpush.msra.mxu0 0.0
    %41 = vmatpush.msra.mxu0 0.0
    %42 = vmatpush.msra.mxu0 0.0
    %43 = vmatpush.msra.mxu0 0.0
    %44 = vmatpush.msra.mxu0 %v20
    %45 = vmatmul.f32.gmra.mxu0 %v24
    %v46 = vpop.f32.mrf.mxu0
    %v47 = vadd.f32 0.0, %v46
    %48 = vmatmul.f32.gmra.mxu0 %v27
    %v49 = vpop.f32.mrf.mxu0
    %v50 = vadd.f32 0.0, %v49
    %51 = vdwg.mxu0
    %52 = vmatpush.msra.mxu0 0.0
    %53 = vmatpush.msra.mxu0 0.0
    %54 = vmatpush.msra.mxu0 0.0
    %55 = vmatpush.msra.mxu0 0.0
    %56 = vmatpush.msra.mxu0 0.0
    %57 = vmatpush.msra.mxu0 0.0
    %58 = vmatpush.msra.mxu0 0.0
    %59 = vmatpush.msra.mxu0 0.0
    %60 = vmatpush.msra.mxu0 0.0
    %61 = vmatpush.msra.mxu0 0.0
    %62 = vmatpush.msra.mxu0 0.0
    %63 = vmatpush.msra.mxu0 0.0
    %64 = vmatpush.msra.mxu0 0.0
    %65 = vmatpush.msra.mxu0 0.0
    %66 = vmatpush.msra.mxu0 0.0
    %67 = vmatpush.msra.mxu0 %v21
    %68 = vmatmul.f32.gmra.mxu0 %v24
    %v69 = vpop.f32.mrf.mxu0
    %v70 = vadd.f32 0.0, %v69
    %71 = vmatmul.f32.gmra.mxu0 %v27
    %v72 = vpop.f32.mrf.mxu0
    %v73 = vadd.f32 0.0, %v72
    %74 = vdwg.mxu0
    %75 = vst [vmem:[#allocation2] sm:$0xff] %v47
    %76 = vst [vmem:[#allocation2 + $0x8] sm:$0xff] %v50
    %v77 = vld [vmem:[%s2] sm:$0x1]
    %v79 = vperm.slane %v77, 0
    %v81 = vadd.f32 %v70, %v79
    %v82 = vadd.f32 %v73, %v79
    %83 = vst [vmem:[#allocation4] sm:$0xff] %v81
    %84 = vst [vmem:[#allocation4 + $0x8] sm:$0xff] %v82
    // Predicated region
    $region14: #{tpu_custom_call.1} parent=1 // pred_check
      _
    $region15: #{tpu_custom_call.1} parent=1 // pred_check_branch
      %86 = sbr.rel (0) target = $region17
    $region16: #{tpu_custom_call.1} parent=1 // pred_region
      %88 = vsyncadd [#allocation3], 0
      %s89 = sshll.u32 [#allocation2], 4
      %s90 = int_to_ptr.vmem [resolvable:$true] %s89
      %s91 = sshll.u32 %s3, 4
      %s92 = int_to_ptr.hbm [resolvable:$true] %s91
      %97 = dma.vmem_to_hbm [thread:$0]  %s90, 256, %s92, [#allocation3], 128, 128, 8
    $region17: #{tpu_custom_call.1} parent=1 // pred_fallthru
      _
    // Predicated region
    $region18: #{tpu_custom_call.1} parent=1 // pred_check
      _
    $region19: #{tpu_custom_call.1} parent=1 // pred_check_branch
      %99 = sbr.rel (0) target = $region21
    $region20: #{tpu_custom_call.1} parent=1 // pred_region
      %101 = vsyncadd [#allocation5], 0
      %s102 = sshll.u32 [#allocation4], 4
      %s103 = int_to_ptr.vmem [resolvable:$true] %s102
      %s104 = sshll.u32 %s4, 4
      %s105 = int_to_ptr.hbm [resolvable:$true] %s104
      %110 = dma.vmem_to_hbm [thread:$0]  %s103, 256, %s105, [#allocation5], 128, 128, 8
    $region21: #{tpu_custom_call.1} parent=1 // pred_fallthru
      _
    // Predicated region
    $region22: #{tpu_custom_call.1} parent=1 // pred_check
      _
    $region23: #{tpu_custom_call.1} parent=1 // pred_check_branch
      %112 = sbr.rel (0) target = $region25
    $region24: #{tpu_custom_call.1} parent=1 // pred_region
      %114 = dma.done [#allocation3], 256
    $region25: #{tpu_custom_call.1} parent=1 // pred_fallthru
      _
    // Predicated region
    $region26: #{tpu_custom_call.1} parent=1 // pred_check
      _
    $region27: #{tpu_custom_call.1} parent=1 // pred_check_branch
      %116 = sbr.rel (0) target = $region29
    $region28: #{tpu_custom_call.1} parent=1 // pred_region
      %118 = dma.done [#allocation5], 256
    $region29: #{tpu_custom_call.1} parent=1 // pred_fallthru
      _
    %119 = vsyncpa [#allocation3], 1
    %120 = vsyncpa [#allocation5], 1

</llo_original>
